<compile_context>
chip_gen: v7x
topology: tpu7x:2x2x1
jax: 0.10.0
libtpu: 0.0.40
codegen_flags: <defaults>
</compile_context>

<pallas_src>
from functools import partial

import jax
import jax.numpy as jnp
from jax.experimental import pallas as pl
from jax.experimental.pallas import tpu as pltpu


NTYPES = ("user", "movie")
# canonical etypes: (src_ntype, relation_name, dst_ntype)
CANONICAL_ETYPES = (("user", "rates", "movie"), ("movie", "rated-by", "user"))
TARGET_NTYPE = "movie"


# ---------------------------------------------------------------------------
# Shared slab layouts (row offsets must match between wrapper and kernel)
# ---------------------------------------------------------------------------
def _r8(n):
    return ((n + 7) // 8) * 8


def _slab_a_layout(num_bases, hidden, num_enc_layers):
    """Slab A (lane width 2H): ft biases + per-encoder-layer params."""
    B, H = num_bases, hidden
    ft_bias_off = 0
    layer_rows = B * H + _r8(B) + H + _r8(1)

    def layer_offsets(l):
        base = _r8(1) + l * layer_rows
        return {
            "bases": base,                          # B*H rows of [V_b | V_b]
            "coef": base + B * H,                   # B rows of widened coefs
            "w_self": base + B * H + _r8(B),        # H rows [W_self_u|W_self_m]
            "bias": base + B * H + _r8(B) + H,      # 1 row [b_u | b_m]
        }

    total_rows = _r8(1) + num_enc_layers * layer_rows
    return ft_bias_off, layer_offsets, total_rows


def _slab_b_layout(in_total, hidden, num_dec_layers):
    """Slab B (lane width H): ft weights + hidden decoder layers."""
    H = hidden
    ft_w_off = 0
    dec_rows = H + _r8(1)

    def dec_offsets(d):
        base = _r8(in_total) + d * dec_rows
        return {"w": base, "b": base + H}

    total_rows = _r8(in_total) + (num_dec_layers - 1) * dec_rows
    return ft_w_off, dec_offsets, total_rows


# ---------------------------------------------------------------------------
# Single fused Pallas kernel: whole forward pass, VMEM-resident
# ---------------------------------------------------------------------------
def _fused_forward_kernel(x_ref, a_ref, sa_ref, sb_ref, sc_ref, o_ref, *,
                          n_user, n_movie, in_total, hidden, num_bases,
                          num_enc_layers, num_dec_layers, out_pad):
    H, B = hidden, num_bases
    n_all = n_user + n_movie
    bf16, f32 = jnp.bfloat16, jnp.float32

    def mxu(a, b):
        # bf16 MXU inputs, f32 accumulation (review item: bf16-native MXU).
        return jnp.dot(a.astype(bf16), b.astype(bf16),
                       preferred_element_type=f32)

    ft_bias_off, enc_off, _ = _slab_a_layout(B, H, num_enc_layers)
    ft_w_off, dec_off, _ = _slab_b_layout(in_total, H, num_dec_layers)

    # Row ordering everywhere: user rows first, then movie rows.
    is_user = jax.lax.broadcasted_iota(jnp.int32, (n_all, H), 0) < n_user

    def pick(wide, user_takes_first):
        """Select per-row the user or movie H-wide column block of `wide`."""
        u_blk = wide[:, 0:H]
        m_blk = wide[:, H:2 * H]
        if user_takes_first:
            return jnp.where(is_user, u_blk, m_blk)
        return jnp.where(is_user, m_blk, u_blk)

    # ---- 1) feature transformer: block-diag Linear + per-type bias + ReLU --
    x_comb = x_ref[...]                                      # [n_all, in_total]
    w_ft = sb_ref[pl.ds(ft_w_off, in_total), :]              # [in_total, H]
    ft_bias = sa_ref[pl.ds(ft_bias_off, 1), :]               # [1, 2H]
    h = mxu(x_comb, w_ft) + pick(ft_bias, user_takes_first=True)
    h = jnp.maximum(h, 0.0)                                  # [n_all, H] f32

    a_bf = a_ref[...].astype(bf16)                           # combined adjacency

    # ---- 2) RGCN encoder layers (unrolled at trace time) -------------------
    # NOTE: hard-codes the 2-relation bipartite structure of CANONICAL_ETYPES
    # (each dst type has exactly one incoming relation).
    for l in range(num_enc_layers):
        off = enc_off(l)

        # Basis decomposition on the VPU: W_rels = [W_r0 | W_r1]  ([H, 2H])
        v_rep = sa_ref[pl.ds(off["bases"], H), :]            # [V_0 | V_0]
        c_row = sa_ref[pl.ds(off["coef"], 1), :]             # widened coef row 0
        w_rels = v_rep * c_row
        for b in range(1, B):
            v_rep = sa_ref[pl.ds(off["bases"] + b * H, H), :]
            c_row = sa_ref[pl.ds(off["coef"] + b, 1), :]
            w_rels = w_rels + v_rep * c_row

        w_self = sa_ref[pl.ds(off["w_self"], H), :]          # [W_self_u|W_self_m]
        bias_w = sa_ref[pl.ds(off["bias"], 1), :]            # [b_u | b_m]

        # Combined aggregation: Z[:n_u] = A_um @ h_m, Z[n_u:] = A_mu @ h_u
        z = mxu(a_bf, h)                                     # [n_all, H]
        q = mxu(z, w_rels)                                   # [n_all, 2H]
        s = mxu(h, w_self)                                   # [n_all, 2H]

        agg = pick(q, user_takes_first=False)   # user dst uses W_r1, movie W_r0
        slf = pick(s, user_takes_first=True)
        bia = pick(bias_w, user_takes_first=True)
        h = jnp.maximum(agg + slf + bia, 0.0)

    # ---- 3) decoder MLP on target node type (movie rows) -------------------
    cur = h[n_user:, :]                                      # [n_movie, H]
    for d in range(num_dec_layers - 1):
        off = dec_off(d)
        w = sb_ref[pl.ds(off["w"], H), :]
        b = sb_ref[pl.ds(off["b"], 1), :]
        cur = jnp.maximum(mxu(cur, w) + b, 0.0)

    # Final Linear padded to a lane-dense (out_pad >= 128) output: avoids an
    # N=1 MXU matmul and masked vst stores; wrapper slices back to out_size.
    w_last = sc_ref[pl.ds(0, H), :]                          # [H, out_pad]
    b_last = sc_ref[pl.ds(H, 1), :]                          # [1, out_pad]
    o_ref[...] = (mxu(cur, w_last) + b_last).astype(o_ref.dtype)


# ---------------------------------------------------------------------------
# Wrapper: pack inputs/params into a few slabs, one fused pallas_call
# ---------------------------------------------------------------------------
def forward(params, adj_norm, x):
    """adj_norm: dict etype -> [n_dst, n_src] mean-normalized adjacency.
    x: dict ntype -> [n_nodes, in_size] raw features."""
    x_u, x_m = x["user"], x["movie"]
    n_user, in_u = x_u.shape
    n_movie, in_m = x_m.shape
    n_all = n_user + n_movie
    in_total = in_u + in_m

    hidden = params["ft"]["user"]["w"].shape[1]
    num_enc_layers = len(params["enc"])
    num_dec_layers = len(params["dec"])
    num_bases = params["enc"][0]["bases"].shape[0]
    out_size = params["dec"][-1]["w"].shape[1]
    out_pad = max(_r8(out_size), 128)
    assert hidden % 8 == 0
    H = hidden
    f32 = jnp.float32

    def pad_rows(a, rows):
        return jnp.pad(a, ((0, rows - a.shape[0]), (0, 0)))

    # --- combined node features (block-diagonal) and adjacency --------------
    x_comb = jnp.zeros((n_all, in_total), f32)
    x_comb = x_comb.at[:n_user, :in_u].set(x_u.astype(f32))
    x_comb = x_comb.at[n_user:, in_u:].set(x_m.astype(f32))

    adj_mu = adj_norm[("user", "rates", "movie")]      # [n_movie, n_user]
    adj_um = adj_norm[("movie", "rated-by", "user")]   # [n_user, n_movie]
    a_comb = jnp.zeros((n_all, n_all), f32)
    a_comb = a_comb.at[:n_user, n_user:].set(adj_um.astype(f32))
    a_comb = a_comb.at[n_user:, :n_user].set(adj_mu.astype(f32))

    # --- slab A (width 2H): ft biases + per-encoder-layer params ------------
    blocks_a = [pad_rows(jnp.concatenate(
        [params["ft"]["user"]["b"], params["ft"]["movie"]["b"]], axis=1),
        _r8(1))]
    for layer in params["enc"]:
        bases = layer["bases"]                                   # [B, H, H]
        bases_rep = jnp.concatenate([bases, bases], axis=2)      # [B, H, 2H]
        bases_rep = bases_rep.reshape(num_bases * H, 2 * H)
        coef_wide = jnp.repeat(layer["coef"].T, H, axis=1)       # [B, 2H]
        w_self_cat = jnp.concatenate(
            [layer["w_self"]["user"], layer["w_self"]["movie"]], axis=1)
        bias_wide = jnp.concatenate(
            [layer["bias"]["user"], layer["bias"]["movie"]], axis=1)
        blocks_a += [bases_rep, pad_rows(coef_wide, _r8(num_bases)),
                     w_self_cat, pad_rows(bias_wide, _r8(1))]
    slab_a = jnp.concatenate(blocks_a, axis=0).astype(f32)

    # --- slab B (width H): ft weights + hidden decoder layers ---------------
    w_ft = jnp.concatenate(
        [params["ft"]["user"]["w"], params["ft"]["movie"]["w"]], axis=0)
    blocks_b = [pad_rows(w_ft, _r8(in_total))]
    for lyr in params["dec"][:-1]:
        blocks_b += [lyr["w"], pad_rows(lyr["b"], _r8(1))]
    slab_b = jnp.concatenate(blocks_b, axis=0).astype(f32)

    # --- slab C (width out_pad): final decoder layer, zero-padded lanes -----
    w_last = jnp.pad(params["dec"][-1]["w"], ((0, 0), (0, out_pad - out_size)))
    b_last = jnp.pad(params["dec"][-1]["b"], ((0, 0), (0, out_pad - out_size)))
    slab_c = jnp.concatenate([w_last, pad_rows(b_last, _r8(1))],
                             axis=0).astype(f32)

    vmem = pl.BlockSpec(memory_space=pltpu.MemorySpace.VMEM)
    kernel = partial(_fused_forward_kernel,
                     n_user=n_user, n_movie=n_movie, in_total=in_total,
                     hidden=hidden, num_bases=num_bases,
                     num_enc_layers=num_enc_layers,
                     num_dec_layers=num_dec_layers, out_pad=out_pad)

    out = pl.pallas_call(
        kernel,
        out_shape=jax.ShapeDtypeStruct((n_movie, out_pad), f32),
        in_specs=[vmem] * 5,
        out_specs=vmem,
        compiler_params=pltpu.CompilerParams(vmem_limit_bytes=32 * 1024 * 1024),
    )(x_comb, a_comb, slab_a, slab_b, slab_c)
    return out[:, :out_size]


# ---------------------------------------------------------------------------
# Parameter setup (plain JAX glue)
# ---------------------------------------------------------------------------
def init_params(key, in_sizes, hidden, num_bases, out_size,
                num_enc_layers, num_dec_layers):
    p = {}
    scale = 0.1

    def nxt():
        nonlocal key
        key, sub = jax.random.split(key)
        return sub

    # feature transformer: one Linear per node type
    p["ft"] = {}
    for nt in NTYPES:
        p["ft"][nt] = {
            "w": scale * jax.random.normal(nxt(), (in_sizes[nt], hidden),
                                           jnp.float32),
            "b": jnp.zeros((1, hidden), jnp.float32),
        }

    # RGCN encoder: per layer -> basis weights, per-relation coefficients,
    # per-dst-ntype self-loop weight + bias
    p["enc"] = []
    n_rel = len(CANONICAL_ETYPES)
    for _ in range(num_enc_layers):
        layer = {
            "bases": scale * jax.random.normal(
                nxt(), (num_bases, hidden, hidden), jnp.float32),
            "coef": scale * jax.random.normal(
                nxt(), (n_rel, num_bases), jnp.float32),
            "w_self": {nt: scale * jax.random.normal(
                nxt(), (hidden, hidden), jnp.float32) for nt in NTYPES},
            "bias": {nt: jnp.zeros((1, hidden), jnp.float32) for nt in NTYPES},
        }
        p["enc"].append(layer)

    # decoder MLP
    p["dec"] = []
    for li in range(num_dec_layers):
        din = hidden
        dout = out_size if li == num_dec_layers - 1 else hidden
        p["dec"].append({
            "w": scale * jax.random.normal(nxt(), (din, dout), jnp.float32),
            "b": jnp.zeros((1, dout), jnp.float32),
        })
    return p


# ---------------------------------------------------------------------------
# Main: deterministic synthetic graph + features
# ---------------------------------------------------------------------------
if __name__ == "__main__":
    key = jax.random.PRNGKey(0)

    n_user, n_movie = 16, 24
    in_sizes = {"user": 24, "movie": 40}
    hidden_size = 32
    num_bases = 2
    out_size = 1
    num_encoder_layers = 2
    num_decoder_layers = 2

    # synthetic bipartite graph (dense adjacency), mean-normalized per dst row
    key, k_adj = jax.random.split(key)
    rates = (jax.random.uniform(k_adj, (n_movie, n_user)) < 0.3
             ).astype(jnp.float32)                        # movie <- user edges

    def row_norm(a):
        deg = jnp.maximum(a.sum(axis=1, keepdims=True), 1.0)
        return a / deg

    adj_norm = {
        ("user", "rates", "movie"): row_norm(rates),       # dst=movie, src=user
        ("movie", "rated-by", "user"): row_norm(rates.T),  # dst=user,  src=movie
    }

    # node features
    key, k_u, k_m = jax.random.split(key, 3)
    x = {
        "user": jax.random.normal(k_u, (n_user, in_sizes["user"]), jnp.float32),
        "movie": jax.random.normal(k_m, (n_movie, in_sizes["movie"]),
                                   jnp.float32),
    }

    key, k_p = jax.random.split(key)
    params = init_params(k_p, in_sizes, hidden_size, num_bases, out_size,
                         num_encoder_layers, num_decoder_layers)

    # TODO(synk): exact MLPFeatureTransformer/MLP internals (dropout, per-feat
    # layer counts) are not in the provided snippet; a standard Linear(+ReLU)
    # stack is used, and ReLU is applied on every encoder layer (same as the
    # previous translation).
    preds = forward(params, adj_norm, x)
    preds = jax.block_until_ready(preds)

    assert preds.shape == (n_movie, out_size)
    assert bool(jnp.all(jnp.isfinite(preds)))
    print("KERNEL_OK")
</pallas_src>

<mosaic_0001>
module attributes {stable_mosaic.version = 11 : i64} {
  func.func @_fused_forward_kernel(%arg0: memref<40x64xf32, #tpu.memory_space<vmem>>, %arg1: memref<40x40xf32, #tpu.memory_space<vmem>>, %arg2: memref<232x64xf32, #tpu.memory_space<vmem>>, %arg3: memref<104x32xf32, #tpu.memory_space<vmem>>, %arg4: memref<40x128xf32, #tpu.memory_space<vmem>>, %arg5: memref<24x128xf32, #tpu.memory_space<vmem>>) attributes {dimension_semantics = [], scalar_prefetch = 0 : i64, scratch_operands = 0 : i64, tpu.core_type = #tpu.core_type<tc>} {
    %0 = tpu.iota {dimensions = array<i32: 0>} : vector<40x32xi32>
    %c16_i32 = arith.constant 16 : i32
    %1 = vector.broadcast %c16_i32 : i32 to vector<40x32xi32>
    %2 = arith.cmpi slt, %0, %1 : vector<40x32xi32>
    %c0 = arith.constant 0 : index
    %c0_0 = arith.constant 0 : index
    %3 = vector.load %arg0[%c0, %c0_0] : memref<40x64xf32, #tpu.memory_space<vmem>>, vector<40x64xf32>
    %c0_1 = arith.constant 0 : index
    %c0_2 = arith.constant 0 : index
    %4 = vector.load %arg3[%c0_1, %c0_2] : memref<104x32xf32, #tpu.memory_space<vmem>>, vector<64x32xf32>
    %c0_3 = arith.constant 0 : index
    %c0_4 = arith.constant 0 : index
    %5 = vector.load %arg2[%c0_3, %c0_4] : memref<232x64xf32, #tpu.memory_space<vmem>>, vector<1x64xf32>
    %6 = arith.truncf %3 : vector<40x64xf32> to vector<40x64xbf16>
    %7 = arith.truncf %4 : vector<64x32xf32> to vector<64x32xbf16>
    %cst = arith.constant dense<0.000000e+00> : vector<40x32xf32>
    %8 = tpu.matmul %6, %7, %cst {dimension_numbers = #tpu.dot_dimension_numbers<[1], [0], [0], [1], [0, 0, 1, 1], [], []>} : vector<40x64xbf16>, vector<64x32xbf16>, vector<40x32xf32> -> vector<40x32xf32>
    %9 = vector.extract_strided_slice %5 {offsets = [0, 0], sizes = [1, 32], strides = [1, 1]} : vector<1x64xf32> to vector<1x32xf32>
    %10 = vector.extract_strided_slice %5 {offsets = [0, 32], sizes = [1, 32], strides = [1, 1]} : vector<1x64xf32> to vector<1x32xf32>
    %11 = vector.shape_cast %9 : vector<1x32xf32> to vector<1x32xf32>
    %12 = vector.broadcast %11 : vector<1x32xf32> to vector<40x32xf32>
    %13 = vector.shape_cast %10 : vector<1x32xf32> to vector<1x32xf32>
    %14 = vector.broadcast %13 : vector<1x32xf32> to vector<40x32xf32>
    %15 = arith.select %2, %12, %14 : vector<40x32xi1>, vector<40x32xf32>
    %16 = arith.addf %8, %15 : vector<40x32xf32>
    %cst_5 = arith.constant 0.000000e+00 : f32
    %17 = vector.broadcast %cst_5 : f32 to vector<40x32xf32>
    %18 = arith.maximumf %16, %17 : vector<40x32xf32>
    %c0_6 = arith.constant 0 : index
    %c0_7 = arith.constant 0 : index
    %19 = vector.load %arg1[%c0_6, %c0_7] : memref<40x40xf32, #tpu.memory_space<vmem>>, vector<40x40xf32>
    %20 = arith.truncf %19 : vector<40x40xf32> to vector<40x40xbf16>
    %c8 = arith.constant 8 : index
    %c0_8 = arith.constant 0 : index
    %21 = vector.load %arg2[%c8, %c0_8] : memref<232x64xf32, #tpu.memory_space<vmem>>, vector<32x64xf32>
    %c72 = arith.constant 72 : index
    %c0_9 = arith.constant 0 : index
    %22 = vector.load %arg2[%c72, %c0_9] : memref<232x64xf32, #tpu.memory_space<vmem>>, vector<1x64xf32>
    %23 = vector.broadcast %22 : vector<1x64xf32> to vector<32x64xf32>
    %24 = arith.mulf %21, %23 : vector<32x64xf32>
    %c40 = arith.constant 40 : index
    %c0_10 = arith.constant 0 : index
    %25 = vector.load %arg2[%c40, %c0_10] : memref<232x64xf32, #tpu.memory_space<vmem>>, vector<32x64xf32>
    %c73 = arith.constant 73 : index
    %c0_11 = arith.constant 0 : index
    %26 = vector.load %arg2[%c73, %c0_11] : memref<232x64xf32, #tpu.memory_space<vmem>>, vector<1x64xf32>
    %27 = vector.broadcast %26 : vector<1x64xf32> to vector<32x64xf32>
    %28 = arith.mulf %25, %27 : vector<32x64xf32>
    %29 = arith.addf %24, %28 : vector<32x64xf32>
    %c80 = arith.constant 80 : index
    %c0_12 = arith.constant 0 : index
    %30 = vector.load %arg2[%c80, %c0_12] : memref<232x64xf32, #tpu.memory_space<vmem>>, vector<32x64xf32>
    %c112 = arith.constant 112 : index
    %c0_13 = arith.constant 0 : index
    %31 = vector.load %arg2[%c112, %c0_13] : memref<232x64xf32, #tpu.memory_space<vmem>>, vector<1x64xf32>
    %32 = arith.truncf %18 : vector<40x32xf32> to vector<40x32xbf16>
    %cst_14 = arith.constant dense<0.000000e+00> : vector<40x32xf32>
    %33 = tpu.matmul %20, %32, %cst_14 {dimension_numbers = #tpu.dot_dimension_numbers<[1], [0], [0], [1], [0, 0, 1, 1], [], []>} : vector<40x40xbf16>, vector<40x32xbf16>, vector<40x32xf32> -> vector<40x32xf32>
    %34 = arith.truncf %33 : vector<40x32xf32> to vector<40x32xbf16>
    %35 = arith.truncf %29 : vector<32x64xf32> to vector<32x64xbf16>
    %cst_15 = arith.constant dense<0.000000e+00> : vector<40x64xf32>
    %36 = tpu.matmul %34, %35, %cst_15 {dimension_numbers = #tpu.dot_dimension_numbers<[1], [0], [0], [1], [0, 0, 1, 1], [], []>} : vector<40x32xbf16>, vector<32x64xbf16>, vector<40x64xf32> -> vector<40x64xf32>
    %37 = arith.truncf %18 : vector<40x32xf32> to vector<40x32xbf16>
    %38 = arith.truncf %30 : vector<32x64xf32> to vector<32x64xbf16>
    %cst_16 = arith.constant dense<0.000000e+00> : vector<40x64xf32>
    %39 = tpu.matmul %37, %38, %cst_16 {dimension_numbers = #tpu.dot_dimension_numbers<[1], [0], [0], [1], [0, 0, 1, 1], [], []>} : vector<40x32xbf16>, vector<32x64xbf16>, vector<40x64xf32> -> vector<40x64xf32>
    %40 = vector.extract_strided_slice %36 {offsets = [0, 0], sizes = [40, 32], strides = [1, 1]} : vector<40x64xf32> to vector<40x32xf32>
    %41 = vector.extract_strided_slice %36 {offsets = [0, 32], sizes = [40, 32], strides = [1, 1]} : vector<40x64xf32> to vector<40x32xf32>
    %42 = arith.select %2, %41, %40 : vector<40x32xi1>, vector<40x32xf32>
    %43 = vector.extract_strided_slice %39 {offsets = [0, 0], sizes = [40, 32], strides = [1, 1]} : vector<40x64xf32> to vector<40x32xf32>
    %44 = vector.extract_strided_slice %39 {offsets = [0, 32], sizes = [40, 32], strides = [1, 1]} : vector<40x64xf32> to vector<40x32xf32>
    %45 = arith.select %2, %43, %44 : vector<40x32xi1>, vector<40x32xf32>
    %46 = vector.extract_strided_slice %31 {offsets = [0, 0], sizes = [1, 32], strides = [1, 1]} : vector<1x64xf32> to vector<1x32xf32>
    %47 = vector.extract_strided_slice %31 {offsets = [0, 32], sizes = [1, 32], strides = [1, 1]} : vector<1x64xf32> to vector<1x32xf32>
    %48 = vector.shape_cast %46 : vector<1x32xf32> to vector<1x32xf32>
    %49 = vector.broadcast %48 : vector<1x32xf32> to vector<40x32xf32>
    %50 = vector.shape_cast %47 : vector<1x32xf32> to vector<1x32xf32>
    %51 = vector.broadcast %50 : vector<1x32xf32> to vector<40x32xf32>
    %52 = arith.select %2, %49, %51 : vector<40x32xi1>, vector<40x32xf32>
    %53 = arith.addf %42, %45 : vector<40x32xf32>
    %54 = arith.addf %53, %52 : vector<40x32xf32>
    %cst_17 = arith.constant 0.000000e+00 : f32
    %55 = vector.broadcast %cst_17 : f32 to vector<40x32xf32>
    %56 = arith.maximumf %54, %55 : vector<40x32xf32>
    %c120 = arith.constant 120 : index
    %c0_18 = arith.constant 0 : index
    %57 = vector.load %arg2[%c120, %c0_18] : memref<232x64xf32, #tpu.memory_space<vmem>>, vector<32x64xf32>
    %c184 = arith.constant 184 : index
    %c0_19 = arith.constant 0 : index
    %58 = vector.load %arg2[%c184, %c0_19] : memref<232x64xf32, #tpu.memory_space<vmem>>, vector<1x64xf32>
    %59 = vector.broadcast %58 : vector<1x64xf32> to vector<32x64xf32>
    %60 = arith.mulf %57, %59 : vector<32x64xf32>
    %c152 = arith.constant 152 : index
    %c0_20 = arith.constant 0 : index
    %61 = vector.load %arg2[%c152, %c0_20] : memref<232x64xf32, #tpu.memory_space<vmem>>, vector<32x64xf32>
    %c185 = arith.constant 185 : index
    %c0_21 = arith.constant 0 : index
    %62 = vector.load %arg2[%c185, %c0_21] : memref<232x64xf32, #tpu.memory_space<vmem>>, vector<1x64xf32>
    %63 = vector.broadcast %62 : vector<1x64xf32> to vector<32x64xf32>
    %64 = arith.mulf %61, %63 : vector<32x64xf32>
    %65 = arith.addf %60, %64 : vector<32x64xf32>
    %c192 = arith.constant 192 : index
    %c0_22 = arith.constant 0 : index
    %66 = vector.load %arg2[%c192, %c0_22] : memref<232x64xf32, #tpu.memory_space<vmem>>, vector<32x64xf32>
    %c224 = arith.constant 224 : index
    %c0_23 = arith.constant 0 : index
    %67 = vector.load %arg2[%c224, %c0_23] : memref<232x64xf32, #tpu.memory_space<vmem>>, vector<1x64xf32>
    %68 = arith.truncf %56 : vector<40x32xf32> to vector<40x32xbf16>
    %cst_24 = arith.constant dense<0.000000e+00> : vector<40x32xf32>
    %69 = tpu.matmul %20, %68, %cst_24 {dimension_numbers = #tpu.dot_dimension_numbers<[1], [0], [0], [1], [0, 0, 1, 1], [], []>} : vector<40x40xbf16>, vector<40x32xbf16>, vector<40x32xf32> -> vector<40x32xf32>
    %70 = arith.truncf %69 : vector<40x32xf32> to vector<40x32xbf16>
    %71 = arith.truncf %65 : vector<32x64xf32> to vector<32x64xbf16>
    %cst_25 = arith.constant dense<0.000000e+00> : vector<40x64xf32>
    %72 = tpu.matmul %70, %71, %cst_25 {dimension_numbers = #tpu.dot_dimension_numbers<[1], [0], [0], [1], [0, 0, 1, 1], [], []>} : vector<40x32xbf16>, vector<32x64xbf16>, vector<40x64xf32> -> vector<40x64xf32>
    %73 = arith.truncf %56 : vector<40x32xf32> to vector<40x32xbf16>
    %74 = arith.truncf %66 : vector<32x64xf32> to vector<32x64xbf16>
    %cst_26 = arith.constant dense<0.000000e+00> : vector<40x64xf32>
    %75 = tpu.matmul %73, %74, %cst_26 {dimension_numbers = #tpu.dot_dimension_numbers<[1], [0], [0], [1], [0, 0, 1, 1], [], []>} : vector<40x32xbf16>, vector<32x64xbf16>, vector<40x64xf32> -> vector<40x64xf32>
    %76 = vector.extract_strided_slice %72 {offsets = [0, 0], sizes = [40, 32], strides = [1, 1]} : vector<40x64xf32> to vector<40x32xf32>
    %77 = vector.extract_strided_slice %72 {offsets = [0, 32], sizes = [40, 32], strides = [1, 1]} : vector<40x64xf32> to vector<40x32xf32>
    %78 = arith.select %2, %77, %76 : vector<40x32xi1>, vector<40x32xf32>
    %79 = vector.extract_strided_slice %75 {offsets = [0, 0], sizes = [40, 32], strides = [1, 1]} : vector<40x64xf32> to vector<40x32xf32>
    %80 = vector.extract_strided_slice %75 {offsets = [0, 32], sizes = [40, 32], strides = [1, 1]} : vector<40x64xf32> to vector<40x32xf32>
    %81 = arith.select %2, %79, %80 : vector<40x32xi1>, vector<40x32xf32>
    %82 = vector.extract_strided_slice %67 {offsets = [0, 0], sizes = [1, 32], strides = [1, 1]} : vector<1x64xf32> to vector<1x32xf32>
    %83 = vector.extract_strided_slice %67 {offsets = [0, 32], sizes = [1, 32], strides = [1, 1]} : vector<1x64xf32> to vector<1x32xf32>
    %84 = vector.shape_cast %82 : vector<1x32xf32> to vector<1x32xf32>
    %85 = vector.broadcast %84 : vector<1x32xf32> to vector<40x32xf32>
    %86 = vector.shape_cast %83 : vector<1x32xf32> to vector<1x32xf32>
    %87 = vector.broadcast %86 : vector<1x32xf32> to vector<40x32xf32>
    %88 = arith.select %2, %85, %87 : vector<40x32xi1>, vector<40x32xf32>
    %89 = arith.addf %78, %81 : vector<40x32xf32>
    %90 = arith.addf %89, %88 : vector<40x32xf32>
    %cst_27 = arith.constant 0.000000e+00 : f32
    %91 = vector.broadcast %cst_27 : f32 to vector<40x32xf32>
    %92 = arith.maximumf %90, %91 : vector<40x32xf32>
    %93 = vector.extract_strided_slice %92 {offsets = [16, 0], sizes = [24, 32], strides = [1, 1]} : vector<40x32xf32> to vector<24x32xf32>
    %c64 = arith.constant 64 : index
    %c0_28 = arith.constant 0 : index
    %94 = vector.load %arg3[%c64, %c0_28] : memref<104x32xf32, #tpu.memory_space<vmem>>, vector<32x32xf32>
    %c96 = arith.constant 96 : index
    %c0_29 = arith.constant 0 : index
    %95 = vector.load %arg3[%c96, %c0_29] : memref<104x32xf32, #tpu.memory_space<vmem>>, vector<1x32xf32>
    %96 = arith.truncf %93 : vector<24x32xf32> to vector<24x32xbf16>
    %97 = arith.truncf %94 : vector<32x32xf32> to vector<32x32xbf16>
    %cst_30 = arith.constant dense<0.000000e+00> : vector<24x32xf32>
    %98 = tpu.matmul %96, %97, %cst_30 {dimension_numbers = #tpu.dot_dimension_numbers<[1], [0], [0], [1], [0, 0, 1, 1], [], []>} : vector<24x32xbf16>, vector<32x32xbf16>, vector<24x32xf32> -> vector<24x32xf32>
    %99 = vector.broadcast %95 : vector<1x32xf32> to vector<24x32xf32>
    %100 = arith.addf %98, %99 : vector<24x32xf32>
    %cst_31 = arith.constant 0.000000e+00 : f32
    %101 = vector.broadcast %cst_31 : f32 to vector<24x32xf32>
    %102 = arith.maximumf %100, %101 : vector<24x32xf32>
    %c0_32 = arith.constant 0 : index
    %c0_33 = arith.constant 0 : index
    %103 = vector.load %arg4[%c0_32, %c0_33] : memref<40x128xf32, #tpu.memory_space<vmem>>, vector<32x128xf32>
    %c32 = arith.constant 32 : index
    %c0_34 = arith.constant 0 : index
    %104 = vector.load %arg4[%c32, %c0_34] : memref<40x128xf32, #tpu.memory_space<vmem>>, vector<1x128xf32>
    %105 = arith.truncf %102 : vector<24x32xf32> to vector<24x32xbf16>
    %106 = arith.truncf %103 : vector<32x128xf32> to vector<32x128xbf16>
    %cst_35 = arith.constant dense<0.000000e+00> : vector<24x128xf32>
    %107 = tpu.matmul %105, %106, %cst_35 {dimension_numbers = #tpu.dot_dimension_numbers<[1], [0], [0], [1], [0, 0, 1, 1], [], []>} : vector<24x32xbf16>, vector<32x128xbf16>, vector<24x128xf32> -> vector<24x128xf32>
    %108 = vector.broadcast %104 : vector<1x128xf32> to vector<24x128xf32>
    %109 = arith.addf %107, %108 : vector<24x128xf32>
    %c0_36 = arith.constant 0 : index
    %c0_37 = arith.constant 0 : index
    %110 = vector.load %arg5[%c0_36, %c0_37] : memref<24x128xf32, #tpu.memory_space<vmem>>, vector<24x128xf32>
    tpu.vector_store %arg5[%c0_36, %c0_37], %109 {strides = array<i32>} : memref<24x128xf32, #tpu.memory_space<vmem>>, vector<24x128xf32>,
    return
  }
}

</mosaic_0001>

<llo_original>
// kernel: tpu_custom_call.1
$region0: #{tpu_custom_call.1}
  #allocation0 [shape = 'u32[]', space=smem, size = 0x4, offset = 0x4, fixed_abs, tag = 'smem constant byte address 0x4 - core index']
  #allocation1 [shape = 'u32[144,128]{1,0:T(1,128)}', space=vmem, size = 0x12000, scoped, tag = 'internal scratch']
  %s0 = inlined_call_operand.vmem [shape: f32[40,64], index: 0, kind: input, shape index: {}]
  %s1 = inlined_call_operand.vmem [shape: f32[40,40], index: 1, kind: input, shape index: {}]
  %s2 = inlined_call_operand.vmem [shape: f32[232,64], index: 2, kind: input, shape index: {}]
  %s3 = inlined_call_operand.vmem [shape: f32[104,32], index: 3, kind: input, shape index: {}]
  %s4 = inlined_call_operand.vmem [shape: f32[40,128], index: 4, kind: input, shape index: {}]
  %s5 = inlined_call_operand.hbm [shape: f32[24,128], index: 5, kind: output, shape index: {}]
  %s6 = sld [smem:[#allocation0]]
  $region30: #{tpu_custom_call.1} parent=0
    _
  %s8 = ssub.s32 1, %s6
  %s9 = scalar_select 0, %s8, %s6
  $region1: #{tpu_custom_call.1} parent=0
    #allocation2 [shape = 'u8[12288]{0}', space=vmem, size = 0x3000, scoped, tag = 'output window, operand 0, single buffered']
    #allocation3 [shape = 's32[1]{0}', space=sflag, size = 0x4, scoped, tag = 'scoped memory for tpu_custom_call.1']
    %10 = vsyncpa [#allocation3], 0
    // Predicated region
    $region2: #{tpu_custom_call.1} parent=1 // pred_check
      _
    $region3: #{tpu_custom_call.1} parent=1 // pred_check_branch
      %12 = sbr.rel (0) target = $region5
    $region4: #{tpu_custom_call.1} parent=1 // pred_region
      _
    $region5: #{tpu_custom_call.1} parent=1 // pred_fallthru
      _
    // Predicated region
    $region6: #{tpu_custom_call.1} parent=1 // pred_check
      _
    $region7: #{tpu_custom_call.1} parent=1 // pred_check_branch
      %14 = sbr.rel (0) target = $region9
    $region8: #{tpu_custom_call.1} parent=1 // pred_region
      _
    $region9: #{tpu_custom_call.1} parent=1 // pred_fallthru
      _
    // Predicated region
    $region10: #{tpu_custom_call.1} parent=1 // pred_check
      _
    $region11: #{tpu_custom_call.1} parent=1 // pred_check_branch
      %16 = sbr.rel (0) target = $region13
    $region12: #{tpu_custom_call.1} parent=1 // pred_region
      _
    $region13: #{tpu_custom_call.1} parent=1 // pred_fallthru
      _
    // Predicated region
    $region14: #{tpu_custom_call.1} parent=1 // pred_check
      _
    $region15: #{tpu_custom_call.1} parent=1 // pred_check_branch
      %18 = sbr.rel (0) target = $region17
    $region16: #{tpu_custom_call.1} parent=1 // pred_region
      _
    $region17: #{tpu_custom_call.1} parent=1 // pred_fallthru
      _
    // Predicated region
    $region18: #{tpu_custom_call.1} parent=1 // pred_check
      _
    $region19: #{tpu_custom_call.1} parent=1 // pred_check_branch
      %20 = sbr.rel (0) target = $region21
    $region20: #{tpu_custom_call.1} parent=1 // pred_region
      _
    $region21: #{tpu_custom_call.1} parent=1 // pred_fallthru
      _
    %v22 = vlaneseq
    %v23 = vshrl.u32 %v22, 7
    %v24 = vadd.s32 %v23, 8
    %v25 = vadd.s32 %v23, 16
    %v26 = vadd.s32 %v23, 24
    %v27 = vadd.s32 %v23, 32
    %vm28 = vcmp.lt.s32.totalorder %v23, 16
    %vm29 = vcmp.lt.s32.totalorder %v24, 16
    %vm30 = vcmp.lt.s32.totalorder %v25, 16
    %vm31 = vcmp.lt.s32.totalorder %v26, 16
    %vm32 = vcmp.lt.s32.totalorder %v27, 16
    %v33 = vld [vmem:[%s0] sm:$0xff]
    %v34 = vld [vmem:[%s0 + $0x8] sm:$0xff]
    %v35 = vld [vmem:[%s0 + $0x10] sm:$0xff]
    %v36 = vld [vmem:[%s0 + $0x18] sm:$0xff]
    %v37 = vld [vmem:[%s0 + $0x20] sm:$0xff]
    %v38 = vld [vmem:[%s3] sm:$0xff]
    %v39 = vld [vmem:[%s3 + $0x8] sm:$0xff]
    %v40 = vld [vmem:[%s3 + $0x10] sm:$0xff]
    %v41 = vld [vmem:[%s3 + $0x18] sm:$0xff]
    %v42 = vld [vmem:[%s3 + $0x20] sm:$0xff]
    %v43 = vld [vmem:[%s3 + $0x28] sm:$0xff]
    %v44 = vld [vmem:[%s3 + $0x30] sm:$0xff]
    %v45 = vld [vmem:[%s3 + $0x38] sm:$0xff]
    %v46 = vld [vmem:[%s2] sm:$0x1]
    %v47 = vpack.c.bf16 %v34, %v33
    %v48 = vpack.c.bf16 %v36, %v35
    %v49 = vpack.c.bf16 %v37, %v37
    %v50 = vpack.c.bf16 %v39, %v38
    %v51 = vpack.c.bf16 %v41, %v40
    %v52 = vpack.c.bf16 %v43, %v42
    %v53 = vpack.c.bf16 %v45, %v44
    %v54 = vlaneseq
    %v55 = vshrl.u32 %v54, 7
    %v56 = vsub.s32 0, %v55
    %v57 = vrot.slane %v46, %v56
    %59 = vrot.lane.b32.xlu0 %v57, 96
    %v60 = vpop.permute.xlu0 %59
    %v62 = vsel %vm28, %v57, %v60
    %v63 = vsel %vm29, %v57, %v60
    %v64 = vsel %vm30, %v57, %v60
    %v65 = vsel %vm31, %v57, %v60
    %v66 = vsel %vm32, %v57, %v60
    %vm67 = vcmask 523264
    %v69 = vsel %vm67, %v47, 0
    %v72 = vsel %vm67, %v48, 0
    %v75 = vsel %vm67, %v49, 0
    %77 = vmatprep.subr.bf16.mxu0 0
    %78 = vmatpush1.bf16.msra.mxu0 %v50
    %79 = vmatprep.subr.bf16.mxu0 0
    %80 = vmatpush1.bf16.msra.mxu0 %v51
    %81 = vmatprep.subr.bf16.mxu0 0
    %82 = vmatpush1.bf16.msra.mxu0 %v52
    %83 = vmatprep.subr.bf16.mxu0 0
    %84 = vmatpush1.bf16.msra.mxu0 %v53
    %85 = vmatprep.subr.bf16.mxu0 0
    %86 = vmatpush1.bf16.msra.mxu0 0
    %87 = vmatprep.subr.bf16.mxu0 0
    %88 = vmatpush1.bf16.msra.mxu0 0
    %89 = vmatprep.subr.bf16.mxu0 0
    %90 = vmatpush1.bf16.msra.mxu0 0
    %91 = vmatprep.subr.bf16.mxu0 0
    %92 = vmatpush1.bf16.msra.mxu0 0
    %93 = vmatprep.subr.bf16.mxu0 0
    %94 = vmatpush1.bf16.msra.mxu0 0
    %95 = vmatprep.subr.bf16.mxu0 0
    %96 = vmatpush1.bf16.msra.mxu0 0
    %97 = vmatprep.subr.bf16.mxu0 0
    %98 = vmatpush1.bf16.msra.mxu0 0
    %99 = vmatprep.subr.bf16.mxu0 0
    %100 = vmatpush1.bf16.msra.mxu0 0
    %101 = vmatprep.subr.bf16.mxu0 0
    %102 = vmatpush1.bf16.msra.mxu0 0
    %103 = vmatprep.subr.bf16.mxu0 0
    %104 = vmatpush1.bf16.msra.mxu0 0
    %105 = vmatprep.subr.bf16.mxu0 0
    %106 = vmatpush1.bf16.msra.mxu0 0
    %107 = vmatprep.subr.bf16.mxu0 0
    %108 = vmatpush1.bf16.msra.mxu0 0
    %109 = vmatprep.mubr.bf16.mxu0 0
    %110 = vmatmul.mubr.bf16.gmra.mrb[0].mxu0 %v69
    %v111 = vpop.f32.mrb[0].mxu0
    %v112 = vadd.f32 %v62, %v111
    %v113 = vpop.f32.mrb[0].mxu0
    %v114 = vpop.f32.mrb[0].mxu0
    %v115 = vadd.f32 %v63, %v114
    %v116 = vpop.f32.mrb[0].mxu0
    %117 = vmatprep.mubr.bf16.mxu0 0
    %118 = vmatmul.mubr.bf16.gmra.mrb[0].mxu0 %v72
    %v119 = vpop.f32.mrb[0].mxu0
    %v120 = vadd.f32 %v64, %v119
    %v121 = vpop.f32.mrb[0].mxu0
    %v122 = vpop.f32.mrb[0].mxu0
    %v123 = vadd.f32 %v65, %v122
    %v124 = vpop.f32.mrb[0].mxu0
    %125 = vmatprep.mubr.bf16.mxu0 0
    %126 = vmatmul.mubr.bf16.gmra.mrb[0].mxu0 %v75
    %v127 = vpop.f32.mrb[0].mxu0
    %v128 = vadd.f32 %v66, %v127
    %v129 = vpop.f32.mrb[0].mxu0
    %v130 = vpop.f32.mrb[0].mxu0
    %v131 = vpop.f32.mrb[0].mxu0
    %132 = vdwg.mxu0
    %v133 = vmax.f32 %v112, 0.0
    %v134 = vmax.f32 %v115, 0.0
    %v135 = vmax.f32 %v120, 0.0
    %v136 = vmax.f32 %v123, 0.0
    %v137 = vmax.f32 %v128, 0.0
    %v138 = vld [vmem:[%s1] sm:$0xff]
    %v139 = vld [vmem:[%s1 + $0x8] sm:$0xff]
    %v140 = vld [vmem:[%s1 + $0x10] sm:$0xff]
    %v141 = vld [vmem:[%s1 + $0x18] sm:$0xff]
    %v142 = vld [vmem:[%s1 + $0x20] sm:$0xff]
    %v143 = vpack.c.bf16 %v139, %v138
    %v144 = vpack.c.bf16 %v141, %v140
    %v145 = vpack.c.bf16 %v142, %v142
    %v146 = vld [vmem:[%s2 + $0x8] sm:$0xff]
    %v147 = vld [vmem:[%s2 + $0x10] sm:$0xff]
    %v148 = vld [vmem:[%s2 + $0x18] sm:$0xff]
    %v149 = vld [vmem:[%s2 + $0x20] sm:$0xff]
    %v150 = vld [vmem:[%s2 + $0x48] sm:$0x1]
    %v151 = vlaneseq
    %v152 = vshrl.u32 %v151, 7
    %v153 = vsub.s32 0, %v152
    %v154 = vrot.slane %v150, %v153
    %v155 = vmul.f32 %v146, %v154
    %v156 = vmul.f32 %v147, %v154
    %v157 = vmul.f32 %v148, %v154
    %v158 = vmul.f32 %v149, %v154
    %v159 = vld [vmem:[%s2 + $0x28] sm:$0xff]
    %v160 = vld [vmem:[%s2 + $0x30] sm:$0xff]
    %v161 = vld [vmem:[%s2 + $0x38] sm:$0xff]
    %v162 = vld [vmem:[%s2 + $0x40] sm:$0xff]
    %v163 = vld [vmem:[%s2 + $0x49] sm:$0x1]
    %v164 = vlaneseq
    %v165 = vshrl.u32 %v164, 7
    %v166 = vsub.s32 0, %v165
    %v167 = vrot.slane %v163, %v166
    %v168 = vmul.f32 %v159, %v167
    %v169 = vmul.f32 %v160, %v167
    %v170 = vmul.f32 %v161, %v167
    %v171 = vmul.f32 %v162, %v167
    %v172 = vadd.f32 %v155, %v168
    %v173 = vadd.f32 %v156, %v169
    %v174 = vadd.f32 %v157, %v170
    %v175 = vadd.f32 %v158, %v171
    %v176 = vld [vmem:[%s2 + $0x50] sm:$0xff]
    %v177 = vld [vmem:[%s2 + $0x58] sm:$0xff]
    %v178 = vld [vmem:[%s2 + $0x60] sm:$0xff]
    %v179 = vld [vmem:[%s2 + $0x68] sm:$0xff]
    %v180 = vld [vmem:[%s2 + $0x70] sm:$0x1]
    %v181 = vpack.c.bf16 %v134, %v133
    %v182 = vpack.c.bf16 %v136, %v135
    %v183 = vpack.c.bf16 %v137, %v137
    %vm184 = vcmask 326656
    %v186 = vsel %vm184, %v143, 0
    %v189 = vsel %vm184, %v144, 0
    %v192 = vsel %vm184, %v145, 0
    %vm194 = vcmask 1043456
    %v196 = vsel %vm194, %v183, 0
    %198 = vmatprep.subr.bf16.mxu0 0
    %199 = vmatpush1.bf16.msra.mxu0 %v181
    %200 = vmatprep.subr.bf16.mxu0 0
    %201 = vmatpush1.bf16.msra.mxu0 %v182
    %202 = vmatprep.subr.bf16.mxu0 0
    %203 = vmatpush1.bf16.msra.mxu0 %v196
    %204 = vmatprep.subr.bf16.mxu0 0
    %205 = vmatpush1.bf16.msra.mxu0 0
    %206 = vmatprep.subr.bf16.mxu0 0
    %207 = vmatpush1.bf16.msra.mxu0 0
    %208 = vmatprep.subr.bf16.mxu0 0
    %209 = vmatpush1.bf16.msra.mxu0 0
    %210 = vmatprep.subr.bf16.mxu0 0
    %211 = vmatpush1.bf16.msra.mxu0 0
    %212 = vmatprep.subr.bf16.mxu0 0
    %213 = vmatpush1.bf16.msra.mxu0 0
    %214 = vmatprep.subr.bf16.mxu0 0
    %215 = vmatpush1.bf16.msra.mxu0 0
    %216 = vmatprep.subr.bf16.mxu0 0
    %217 = vmatpush1.bf16.msra.mxu0 0
    %218 = vmatprep.subr.bf16.mxu0 0
    %219 = vmatpush1.bf16.msra.mxu0 0
    %220 = vmatprep.subr.bf16.mxu0 0
    %221 = vmatpush1.bf16.msra.mxu0 0
    %222 = vmatprep.subr.bf16.mxu0 0
    %223 = vmatpush1.bf16.msra.mxu0 0
    %224 = vmatprep.subr.bf16.mxu0 0
    %225 = vmatpush1.bf16.msra.mxu0 0
    %226 = vmatprep.subr.bf16.mxu0 0
    %227 = vmatpush1.bf16.msra.mxu0 0
    %228 = vmatprep.subr.bf16.mxu0 0
    %229 = vmatpush1.bf16.msra.mxu0 0
    %230 = vmatprep.mubr.bf16.mxu0 0
    %231 = vmatmul.mubr.bf16.gmra.mrb[0].mxu0 %v186
    %v232 = vpop.f32.mrb[0].mxu0
    %v233 = vadd.f32 0.0, %v232
    %v234 = vpop.f32.mrb[0].mxu0
    %v235 = vpop.f32.mrb[0].mxu0
    %v236 = vadd.f32 0.0, %v235
    %v237 = vpop.f32.mrb[0].mxu0
    %238 = vmatprep.mubr.bf16.mxu0 0
    %239 = vmatmul.mubr.bf16.gmra.mrb[0].mxu0 %v189
    %v240 = vpop.f32.mrb[0].mxu0
    %v241 = vadd.f32 0.0, %v240
    %v242 = vpop.f32.mrb[0].mxu0
    %v243 = vpop.f32.mrb[0].mxu0
    %v244 = vadd.f32 0.0, %v243
    %v245 = vpop.f32.mrb[0].mxu0
    %246 = vmatprep.mubr.bf16.mxu0 0
    %247 = vmatmul.mubr.bf16.gmra.mrb[0].mxu0 %v192
    %v248 = vpop.f32.mrb[0].mxu0
    %v249 = vadd.f32 0.0, %v248
    %v250 = vpop.f32.mrb[0].mxu0
    %v251 = vpop.f32.mrb[0].mxu0
    %v252 = vpop.f32.mrb[0].mxu0
    %253 = vdwg.mxu0
    %v254 = vpack.c.bf16 %v236, %v233
    %v255 = vpack.c.bf16 %v244, %v241
    %v256 = vpack.c.bf16 %v249, %v249
    %v257 = vpack.c.bf16 %v173, %v172
    %v258 = vpack.c.bf16 %v175, %v174
    %vm259 = vcmask 261120
    %v261 = vsel %vm259, %v254, 0
    %v264 = vsel %vm259, %v255, 0
    %v267 = vsel %vm259, %v256, 0
    %269 = vmatprep.subr.bf16.mxu0 0
    %270 = vmatpush1.bf16.msra.mxu0 %v257
    %271 = vmatprep.subr.bf16.mxu0 0
    %272 = vmatpush1.bf16.msra.mxu0 %v258
    %273 = vmatprep.subr.bf16.mxu0 0
    %274 = vmatpush1.bf16.msra.mxu0 0
    %275 = vmatprep.subr.bf16.mxu0 0
    %276 = vmatpush1.bf16.msra.mxu0 0
    %277 = vmatprep.subr.bf16.mxu0 0
    %278 = vmatpush1.bf16.msra.mxu0 0
    %279 = vmatprep.subr.bf16.mxu0 0
    %280 = vmatpush1.bf16.msra.mxu0 0
    %281 = vmatprep.subr.bf16.mxu0 0
    %282 = vmatpush1.bf16.msra.mxu0 0
    %283 = vmatprep.subr.bf16.mxu0 0
    %284 = vmatpush1.bf16.msra.mxu0 0
    %285 = vmatprep.subr.bf16.mxu0 0
    %286 = vmatpush1.bf16.msra.mxu0 0
    %287 = vmatprep.subr.bf16.mxu0 0
    %288 = vmatpush1.bf16.msra.mxu0 0
    %289 = vmatprep.subr.bf16.mxu0 0
    %290 = vmatpush1.bf16.msra.mxu0 0
    %291 = vmatprep.subr.bf16.mxu0 0
    %292 = vmatpush1.bf16.msra.mxu0 0
    %293 = vmatprep.subr.bf16.mxu0 0
    %294 = vmatpush1.bf16.msra.mxu0 0
    %295 = vmatprep.subr.bf16.mxu0 0
    %296 = vmatpush1.bf16.msra.mxu0 0
    %297 = vmatprep.subr.bf16.mxu0 0
    %298 = vmatpush1.bf16.msra.mxu0 0
    %299 = vmatprep.subr.bf16.mxu0 0
    %300 = vmatpush1.bf16.msra.mxu0 0
    %301 = vmatprep.mubr.bf16.mxu0 0
    %302 = vmatmul.mubr.bf16.gmra.mrb[0].mxu0 %v261
    %v303 = vpop.f32.mrb[0].mxu0
    %v304 = vadd.f32 0.0, %v303
    %v305 = vpop.f32.mrb[0].mxu0
    %v306 = vpop.f32.mrb[0].mxu0
    %v307 = vadd.f32 0.0, %v306
    %v308 = vpop.f32.mrb[0].mxu0
    %309 = vmatprep.mubr.bf16.mxu0 0
    %310 = vmatmul.mubr.bf16.gmra.mrb[0].mxu0 %v264
    %v311 = vpop.f32.mrb[0].mxu0
    %v312 = vadd.f32 0.0, %v311
    %v313 = vpop.f32.mrb[0].mxu0
    %v314 = vpop.f32.mrb[0].mxu0
    %v315 = vadd.f32 0.0, %v314
    %v316 = vpop.f32.mrb[0].mxu0
    %317 = vmatprep.mubr.bf16.mxu0 0
    %318 = vmatmul.mubr.bf16.gmra.mrb[0].mxu0 %v267
    %v319 = vpop.f32.mrb[0].mxu0
    %v320 = vadd.f32 0.0, %v319
    %v321 = vpop.f32.mrb[0].mxu0
    %v322 = vpop.f32.mrb[0].mxu0
    %v323 = vpop.f32.mrb[0].mxu0
    %324 = vdwg.mxu0
    %v325 = vpack.c.bf16 %v177, %v176
    %v326 = vpack.c.bf16 %v179, %v178
    %v328 = vsel %vm259, %v181, 0
    %v331 = vsel %vm259, %v182, 0
    %v333 = vsel %vm259, %v183, 0
    %335 = vmatprep.subr.bf16.mxu0 0
    %336 = vmatpush1.bf16.msra.mxu0 %v325
    %337 = vmatprep.subr.bf16.mxu0 0
    %338 = vmatpush1.bf16.msra.mxu0 %v326
    %339 = vmatprep.subr.bf16.mxu0 0
    %340 = vmatpush1.bf16.msra.mxu0 0
    %341 = vmatprep.subr.bf16.mxu0 0
    %342 = vmatpush1.bf16.msra.mxu0 0
    %343 = vmatprep.subr.bf16.mxu0 0
    %344 = vmatpush1.bf16.msra.mxu0 0
    %345 = vmatprep.subr.bf16.mxu0 0
    %346 = vmatpush1.bf16.msra.mxu0 0
    %347 = vmatprep.subr.bf16.mxu0 0
    %348 = vmatpush1.bf16.msra.mxu0 0
    %349 = vmatprep.subr.bf16.mxu0 0
    %350 = vmatpush1.bf16.msra.mxu0 0
    %351 = vmatprep.subr.bf16.mxu0 0
    %352 = vmatpush1.bf16.msra.mxu0 0
    %353 = vmatprep.subr.bf16.mxu0 0
    %354 = vmatpush1.bf16.msra.mxu0 0
    %355 = vmatprep.subr.bf16.mxu0 0
    %356 = vmatpush1.bf16.msra.mxu0 0
    %357 = vmatprep.subr.bf16.mxu0 0
    %358 = vmatpush1.bf16.msra.mxu0 0
    %359 = vmatprep.subr.bf16.mxu0 0
    %360 = vmatpush1.bf16.msra.mxu0 0
    %361 = vmatprep.subr.bf16.mxu0 0
    %362 = vmatpush1.bf16.msra.mxu0 0
    %363 = vmatprep.subr.bf16.mxu0 0
    %364 = vmatpush1.bf16.msra.mxu0 0
    %365 = vmatprep.subr.bf16.mxu0 0
    %366 = vmatpush1.bf16.msra.mxu0 0
    %367 = vmatprep.mubr.bf16.mxu0 0
    %368 = vmatmul.mubr.bf16.gmra.mrb[0].mxu0 %v328
    %v369 = vpop.f32.mrb[0].mxu0
    %v370 = vadd.f32 0.0, %v369
    %v371 = vpop.f32.mrb[0].mxu0
    %v372 = vpop.f32.mrb[0].mxu0
    %v373 = vadd.f32 0.0, %v372
    %v374 = vpop.f32.mrb[0].mxu0
    %375 = vmatprep.mubr.bf16.mxu0 0
    %376 = vmatmul.mubr.bf16.gmra.mrb[0].mxu0 %v331
    %v377 = vpop.f32.mrb[0].mxu0
    %v378 = vadd.f32 0.0, %v377
    %v379 = vpop.f32.mrb[0].mxu0
    %v380 = vpop.f32.mrb[0].mxu0
    %v381 = vadd.f32 0.0, %v380
    %v382 = vpop.f32.mrb[0].mxu0
    %383 = vmatprep.mubr.bf16.mxu0 0
    %384 = vmatmul.mubr.bf16.gmra.mrb[0].mxu0 %v333
    %v385 = vpop.f32.mrb[0].mxu0
    %v386 = vadd.f32 0.0, %v385
    %v387 = vpop.f32.mrb[0].mxu0
    %v388 = vpop.f32.mrb[0].mxu0
    %v389 = vpop.f32.mrb[0].mxu0
    %390 = vdwg.mxu0
    %396 = vrot.lane.b32.xlu0 %v304, 32
    %v397 = vpop.permute.xlu0 %396
    %398 = vrot.lane.b32.xlu0 %v307, 32
    %v399 = vpop.permute.xlu0 %398
    %400 = vrot.lane.b32.xlu0 %v312, 32
    %v401 = vpop.permute.xlu0 %400
    %402 = vrot.lane.b32.xlu0 %v315, 32
    %v403 = vpop.permute.xlu0 %402
    %404 = vrot.lane.b32.xlu0 %v320, 32
    %v405 = vpop.permute.xlu0 %404
    %v411 = vsel %vm28, %v304, %v397
    %v412 = vsel %vm29, %v307, %v399
    %v413 = vsel %vm30, %v312, %v401
    %v414 = vsel %vm31, %v315, %v403
    %v415 = vsel %vm32, %v320, %v405
    %421 = vrot.lane.b32.xlu0 %v370, 96
    %v422 = vpop.permute.xlu0 %421
    %423 = vrot.lane.b32.xlu0 %v373, 96
    %v424 = vpop.permute.xlu0 %423
    %425 = vrot.lane.b32.xlu0 %v378, 96
    %v426 = vpop.permute.xlu0 %425
    %427 = vrot.lane.b32.xlu0 %v381, 96
    %v428 = vpop.permute.xlu0 %427
    %429 = vrot.lane.b32.xlu0 %v386, 96
    %v430 = vpop.permute.xlu0 %429
    %v436 = vsel %vm28, %v370, %v422
    %v437 = vsel %vm29, %v373, %v424
    %v438 = vsel %vm30, %v378, %v426
    %v439 = vsel %vm31, %v381, %v428
    %v440 = vsel %vm32, %v386, %v430
    %v441 = vlaneseq
    %v442 = vshrl.u32 %v441, 7
    %v443 = vsub.s32 0, %v442
    %v444 = vrot.slane %v180, %v443
    %446 = vrot.lane.b32.xlu0 %v444, 96
    %v447 = vpop.permute.xlu0 %446
    %v449 = vsel %vm28, %v444, %v447
    %v450 = vsel %vm29, %v444, %v447
    %v451 = vsel %vm30, %v444, %v447
    %v452 = vsel %vm31, %v444, %v447
    %v453 = vsel %vm32, %v444, %v447
    %459 = vrot.lane.b32.xlu0 %v436, 32
    %v460 = vpop.permute.xlu0 %459
    %461 = vrot.lane.b32.xlu0 %v437, 32
    %v462 = vpop.permute.xlu0 %461
    %463 = vrot.lane.b32.xlu0 %v438, 32
    %v464 = vpop.permute.xlu0 %463
    %465 = vrot.lane.b32.xlu0 %v439, 32
    %v466 = vpop.permute.xlu0 %465
    %467 = vrot.lane.b32.xlu0 %v440, 32
    %v468 = vpop.permute.xlu0 %467
    %v474 = vadd.f32 %v411, %v460
    %v475 = vadd.f32 %v412, %v462
    %v476 = vadd.f32 %v413, %v464
    %v477 = vadd.f32 %v414, %v466
    %v478 = vadd.f32 %v415, %v468
    %484 = vrot.lane.b32.xlu0 %v449, 32
    %v485 = vpop.permute.xlu0 %484
    %486 = vrot.lane.b32.xlu0 %v450, 32
    %v487 = vpop.permute.xlu0 %486
    %488 = vrot.lane.b32.xlu0 %v451, 32
    %v489 = vpop.permute.xlu0 %488
    %490 = vrot.lane.b32.xlu0 %v452, 32
    %v491 = vpop.permute.xlu0 %490
    %492 = vrot.lane.b32.xlu0 %v453, 32
    %v493 = vpop.permute.xlu0 %492
    %v499 = vadd.f32 %v474, %v485
    %v500 = vadd.f32 %v475, %v487
    %v501 = vadd.f32 %v476, %v489
    %v502 = vadd.f32 %v477, %v491
    %v503 = vadd.f32 %v478, %v493
    %v504 = vmax.f32 %v499, 0.0
    %v505 = vmax.f32 %v500, 0.0
    %v506 = vmax.f32 %v501, 0.0
    %v507 = vmax.f32 %v502, 0.0
    %v508 = vmax.f32 %v503, 0.0
    %v509 = vld [vmem:[%s2 + $0x78] sm:$0xff]
    %v510 = vld [vmem:[%s2 + $0x80] sm:$0xff]
    %v511 = vld [vmem:[%s2 + $0x88] sm:$0xff]
    %v512 = vld [vmem:[%s2 + $0x90] sm:$0xff]
    %v513 = vld [vmem:[%s2 + $0xb8] sm:$0x1]
    %v514 = vlaneseq
    %v515 = vshrl.u32 %v514, 7
    %v516 = vsub.s32 0, %v515
    %v517 = vrot.slane %v513, %v516
    %v518 = vmul.f32 %v509, %v517
    %v519 = vmul.f32 %v510, %v517
    %v520 = vmul.f32 %v511, %v517
    %v521 = vmul.f32 %v512, %v517
    %v522 = vld [vmem:[%s2 + $0x98] sm:$0xff]
    %v523 = vld [vmem:[%s2 + $0xa0] sm:$0xff]
    %v524 = vld [vmem:[%s2 + $0xa8] sm:$0xff]
    %v525 = vld [vmem:[%s2 + $0xb0] sm:$0xff]
    %v526 = vld [vmem:[%s2 + $0xb9] sm:$0x1]
    %v527 = vlaneseq
    %v528 = vshrl.u32 %v527, 7
    %v529 = vsub.s32 0, %v528
    %v530 = vrot.slane %v526, %v529
    %v531 = vmul.f32 %v522, %v530
    %v532 = vmul.f32 %v523, %v530
    %v533 = vmul.f32 %v524, %v530
    %v534 = vmul.f32 %v525, %v530
    %v535 = vadd.f32 %v518, %v531
    %v536 = vadd.f32 %v519, %v532
    %v537 = vadd.f32 %v520, %v533
    %v538 = vadd.f32 %v521, %v534
    %v539 = vld [vmem:[%s2 + $0xc0] sm:$0xff]
    %v540 = vld [vmem:[%s2 + $0xc8] sm:$0xff]
    %v541 = vld [vmem:[%s2 + $0xd0] sm:$0xff]
    %v542 = vld [vmem:[%s2 + $0xd8] sm:$0xff]
    %v543 = vld [vmem:[%s2 + $0xe0] sm:$0x1]
    %v544 = vpack.c.bf16 %v505, %v504
    %v545 = vpack.c.bf16 %v507, %v506
    %v546 = vpack.c.bf16 %v508, %v508
    %550 = vrot.lane.b32.xlu0 %v544, 96
    %v551 = vpop.permute.xlu0 %550
    %552 = vrot.lane.b32.xlu0 %v545, 96
    %v553 = vpop.permute.xlu0 %552
    %554 = vrot.lane.b32.xlu0 %v546, 96
    %v555 = vpop.permute.xlu0 %554
    %v559 = vsel %vm194, %v555, 0
    %561 = vmatprep.subr.bf16.mxu0 0
    %562 = vmatpush1.bf16.msra.mxu0 %v551
    %563 = vmatprep.subr.bf16.mxu0 0
    %564 = vmatpush1.bf16.msra.mxu0 %v553
    %565 = vmatprep.subr.bf16.mxu0 0
    %566 = vmatpush1.bf16.msra.mxu0 %v559
    %567 = vmatprep.subr.bf16.mxu0 0
    %568 = vmatpush1.bf16.msra.mxu0 0
    %569 = vmatprep.subr.bf16.mxu0 0
    %570 = vmatpush1.bf16.msra.mxu0 0
    %571 = vmatprep.subr.bf16.mxu0 0
    %572 = vmatpush1.bf16.msra.mxu0 0
    %573 = vmatprep.subr.bf16.mxu0 0
    %574 = vmatpush1.bf16.msra.mxu0 0
    %575 = vmatprep.subr.bf16.mxu0 0
    %576 = vmatpush1.bf16.msra.mxu0 0
    %577 = vmatprep.subr.bf16.mxu0 0
    %578 = vmatpush1.bf16.msra.mxu0 0
    %579 = vmatprep.subr.bf16.mxu0 0
    %580 = vmatpush1.bf16.msra.mxu0 0
    %581 = vmatprep.subr.bf16.mxu0 0
    %582 = vmatpush1.bf16.msra.mxu0 0
    %583 = vmatprep.subr.bf16.mxu0 0
    %584 = vmatpush1.bf16.msra.mxu0 0
    %585 = vmatprep.subr.bf16.mxu0 0
    %586 = vmatpush1.bf16.msra.mxu0 0
    %587 = vmatprep.subr.bf16.mxu0 0
    %588 = vmatpush1.bf16.msra.mxu0 0
    %589 = vmatprep.subr.bf16.mxu0 0
    %590 = vmatpush1.bf16.msra.mxu0 0
    %591 = vmatprep.subr.bf16.mxu0 0
    %592 = vmatpush1.bf16.msra.mxu0 0
    %593 = vmatprep.mubr.bf16.mxu0 0
    %594 = vmatmul.mubr.bf16.gmra.mrb[0].mxu0 %v186
    %v595 = vpop.f32.mrb[0].mxu0
    %v596 = vadd.f32 0.0, %v595
    %v597 = vpop.f32.mrb[0].mxu0
    %v598 = vpop.f32.mrb[0].mxu0
    %v599 = vadd.f32 0.0, %v598
    %v600 = vpop.f32.mrb[0].mxu0
    %601 = vmatprep.mubr.bf16.mxu0 0
    %602 = vmatmul.mubr.bf16.gmra.mrb[0].mxu0 %v189
    %v603 = vpop.f32.mrb[0].mxu0
    %v604 = vadd.f32 0.0, %v603
    %v605 = vpop.f32.mrb[0].mxu0
    %v606 = vpop.f32.mrb[0].mxu0
    %v607 = vadd.f32 0.0, %v606
    %v608 = vpop.f32.mrb[0].mxu0
    %609 = vmatprep.mubr.bf16.mxu0 0
    %610 = vmatmul.mubr.bf16.gmra.mrb[0].mxu0 %v192
    %v611 = vpop.f32.mrb[0].mxu0
    %v612 = vadd.f32 0.0, %v611
    %v613 = vpop.f32.mrb[0].mxu0
    %v614 = vpop.f32.mrb[0].mxu0
    %v615 = vpop.f32.mrb[0].mxu0
    %616 = vdwg.mxu0
    %v617 = vpack.c.bf16 %v599, %v596
    %v618 = vpack.c.bf16 %v607, %v604
    %v619 = vpack.c.bf16 %v612, %v612
    %v620 = vpack.c.bf16 %v536, %v535
    %v621 = vpack.c.bf16 %v538, %v537
    %v623 = vsel %vm259, %v617, 0
    %v626 = vsel %vm259, %v618, 0
    %v629 = vsel %vm259, %v619, 0
    %631 = vmatprep.subr.bf16.mxu0 0
    %632 = vmatpush1.bf16.msra.mxu0 %v620
    %633 = vmatprep.subr.bf16.mxu0 0
    %634 = vmatpush1.bf16.msra.mxu0 %v621
    %635 = vmatprep.subr.bf16.mxu0 0
    %636 = vmatpush1.bf16.msra.mxu0 0
    %637 = vmatprep.subr.bf16.mxu0 0
    %638 = vmatpush1.bf16.msra.mxu0 0
    %639 = vmatprep.subr.bf16.mxu0 0
    %640 = vmatpush1.bf16.msra.mxu0 0
    %641 = vmatprep.subr.bf16.mxu0 0
    %642 = vmatpush1.bf16.msra.mxu0 0
    %643 = vmatprep.subr.bf16.mxu0 0
    %644 = vmatpush1.bf16.msra.mxu0 0
    %645 = vmatprep.subr.bf16.mxu0 0
    %646 = vmatpush1.bf16.msra.mxu0 0
    %647 = vmatprep.subr.bf16.mxu0 0
    %648 = vmatpush1.bf16.msra.mxu0 0
    %649 = vmatprep.subr.bf16.mxu0 0
    %650 = vmatpush1.bf16.msra.mxu0 0
    %651 = vmatprep.subr.bf16.mxu0 0
    %652 = vmatpush1.bf16.msra.mxu0 0
    %653 = vmatprep.subr.bf16.mxu0 0
    %654 = vmatpush1.bf16.msra.mxu0 0
    %655 = vmatprep.subr.bf16.mxu0 0
    %656 = vmatpush1.bf16.msra.mxu0 0
    %657 = vmatprep.subr.bf16.mxu0 0
    %658 = vmatpush1.bf16.msra.mxu0 0
    %659 = vmatprep.subr.bf16.mxu0 0
    %660 = vmatpush1.bf16.msra.mxu0 0
    %661 = vmatprep.subr.bf16.mxu0 0
    %662 = vmatpush1.bf16.msra.mxu0 0
    %663 = vmatprep.mubr.bf16.mxu0 0
    %664 = vmatmul.mubr.bf16.gmra.mrb[0].mxu0 %v623
    %v665 = vpop.f32.mrb[0].mxu0
    %v666 = vpop.f32.mrb[0].mxu0
    %v667 = vpop.f32.mrb[0].mxu0
    %v668 = vpop.f32.mrb[0].mxu0
    %669 = vmatprep.mubr.bf16.mxu0 0
    %670 = vmatmul.mubr.bf16.gmra.mrb[0].mxu0 %v626
    %v671 = vpop.f32.mrb[0].mxu0
    %v672 = vadd.f32 0.0, %v671
    %v673 = vpop.f32.mrb[0].mxu0
    %v674 = vpop.f32.mrb[0].mxu0
    %v675 = vadd.f32 0.0, %v674
    %v676 = vpop.f32.mrb[0].mxu0
    %677 = vmatprep.mubr.bf16.mxu0 0
    %678 = vmatmul.mubr.bf16.gmra.mrb[0].mxu0 %v629
    %v679 = vpop.f32.mrb[0].mxu0
    %v680 = vadd.f32 0.0, %v679
    %v681 = vpop.f32.mrb[0].mxu0
    %v682 = vpop.f32.mrb[0].mxu0
    %v683 = vpop.f32.mrb[0].mxu0
    %684 = vdwg.mxu0
    %v685 = vpack.c.bf16 %v540, %v539
    %v686 = vpack.c.bf16 %v542, %v541
    %v688 = vsel %vm259, %v551, 0
    %v691 = vsel %vm259, %v553, 0
    %v693 = vsel %vm259, %v555, 0
    %695 = vmatprep.subr.bf16.mxu0 0
    %696 = vmatpush1.bf16.msra.mxu0 %v685
    %697 = vmatprep.subr.bf16.mxu0 0
    %698 = vmatpush1.bf16.msra.mxu0 %v686
    %699 = vmatprep.subr.bf16.mxu0 0
    %700 = vmatpush1.bf16.msra.mxu0 0
    %701 = vmatprep.subr.bf16.mxu0 0
    %702 = vmatpush1.bf16.msra.mxu0 0
    %703 = vmatprep.subr.bf16.mxu0 0
    %704 = vmatpush1.bf16.msra.mxu0 0
    %705 = vmatprep.subr.bf16.mxu0 0
    %706 = vmatpush1.bf16.msra.mxu0 0
    %707 = vmatprep.subr.bf16.mxu0 0
    %708 = vmatpush1.bf16.msra.mxu0 0
    %709 = vmatprep.subr.bf16.mxu0 0
    %710 = vmatpush1.bf16.msra.mxu0 0
    %711 = vmatprep.subr.bf16.mxu0 0
    %712 = vmatpush1.bf16.msra.mxu0 0
    %713 = vmatprep.subr.bf16.mxu0 0
    %714 = vmatpush1.bf16.msra.mxu0 0
    %715 = vmatprep.subr.bf16.mxu0 0
    %716 = vmatpush1.bf16.msra.mxu0 0
    %717 = vmatprep.subr.bf16.mxu0 0
    %718 = vmatpush1.bf16.msra.mxu0 0
    %719 = vmatprep.subr.bf16.mxu0 0
    %720 = vmatpush1.bf16.msra.mxu0 0
    %721 = vmatprep.subr.bf16.mxu0 0
    %722 = vmatpush1.bf16.msra.mxu0 0
    %723 = vmatprep.subr.bf16.mxu0 0
    %724 = vmatpush1.bf16.msra.mxu0 0
    %725 = vmatprep.subr.bf16.mxu0 0
    %726 = vmatpush1.bf16.msra.mxu0 0
    %727 = vmatprep.mubr.bf16.mxu0 0
    %728 = vmatmul.mubr.bf16.gmra.mrb[0].mxu0 %v688
    %v729 = vpop.f32.mrb[0].mxu0
    %v730 = vpop.f32.mrb[0].mxu0
    %v731 = vpop.f32.mrb[0].mxu0
    %v732 = vpop.f32.mrb[0].mxu0
    %733 = vmatprep.mubr.bf16.mxu0 0
    %734 = vmatmul.mubr.bf16.gmra.mrb[0].mxu0 %v691
    %v735 = vpop.f32.mrb[0].mxu0
    %v736 = vadd.f32 0.0, %v735
    %v737 = vpop.f32.mrb[0].mxu0
    %v738 = vpop.f32.mrb[0].mxu0
    %v739 = vadd.f32 0.0, %v738
    %v740 = vpop.f32.mrb[0].mxu0
    %741 = vmatprep.mubr.bf16.mxu0 0
    %742 = vmatmul.mubr.bf16.gmra.mrb[0].mxu0 %v693
    %v743 = vpop.f32.mrb[0].mxu0
    %v744 = vadd.f32 0.0, %v743
    %v745 = vpop.f32.mrb[0].mxu0
    %v746 = vpop.f32.mrb[0].mxu0
    %v747 = vpop.f32.mrb[0].mxu0
    %748 = vdwg.mxu0
    %752 = vrot.lane.b32.xlu0 %v672, 32
    %v753 = vpop.permute.xlu0 %752
    %754 = vrot.lane.b32.xlu0 %v675, 32
    %v755 = vpop.permute.xlu0 %754
    %756 = vrot.lane.b32.xlu0 %v680, 32
    %v757 = vpop.permute.xlu0 %756
    %v761 = vsel %vm30, %v672, %v753
    %v762 = vsel %vm31, %v675, %v755
    %v763 = vsel %vm32, %v680, %v757
    %767 = vrot.lane.b32.xlu0 %v736, 96
    %v768 = vpop.permute.xlu0 %767
    %769 = vrot.lane.b32.xlu0 %v739, 96
    %v770 = vpop.permute.xlu0 %769
    %771 = vrot.lane.b32.xlu0 %v744, 96
    %v772 = vpop.permute.xlu0 %771
    %v776 = vsel %vm30, %v736, %v768
    %v777 = vsel %vm31, %v739, %v770
    %v778 = vsel %vm32, %v744, %v772
    %v779 = vlaneseq
    %v780 = vshrl.u32 %v779, 7
    %v781 = vsub.s32 0, %v780
    %v782 = vrot.slane %v543, %v781
    %784 = vrot.lane.b32.xlu0 %v782, 96
    %v785 = vpop.permute.xlu0 %784
    %v787 = vsel %vm30, %v782, %v785
    %v788 = vsel %vm31, %v782, %v785
    %v789 = vsel %vm32, %v782, %v785
    %793 = vrot.lane.b32.xlu0 %v776, 32
    %v794 = vpop.permute.xlu0 %793
    %795 = vrot.lane.b32.xlu0 %v777, 32
    %v796 = vpop.permute.xlu0 %795
    %797 = vrot.lane.b32.xlu0 %v778, 32
    %v798 = vpop.permute.xlu0 %797
    %v802 = vadd.f32 %v761, %v794
    %v803 = vadd.f32 %v762, %v796
    %v804 = vadd.f32 %v763, %v798
    %808 = vrot.lane.b32.xlu0 %v787, 32
    %v809 = vpop.permute.xlu0 %808
    %810 = vrot.lane.b32.xlu0 %v788, 32
    %v811 = vpop.permute.xlu0 %810
    %812 = vrot.lane.b32.xlu0 %v789, 32
    %v813 = vpop.permute.xlu0 %812
    %v817 = vadd.f32 %v802, %v809
    %v818 = vadd.f32 %v803, %v811
    %v819 = vadd.f32 %v804, %v813
    %v820 = vmax.f32 %v817, 0.0
    %v821 = vmax.f32 %v818, 0.0
    %v822 = vmax.f32 %v819, 0.0
    %v823 = vld [vmem:[%s3 + $0x40] sm:$0xff]
    %v824 = vld [vmem:[%s3 + $0x48] sm:$0xff]
    %v825 = vld [vmem:[%s3 + $0x50] sm:$0xff]
    %v826 = vld [vmem:[%s3 + $0x58] sm:$0xff]
    %v827 = vld [vmem:[%s3 + $0x60] sm:$0x1]
    %v828 = vpack.c.bf16 %v821, %v820
    %v829 = vpack.c.bf16 %v822, %v822
    %v830 = vpack.c.bf16 %v824, %v823
    %v831 = vpack.c.bf16 %v826, %v825
    %v832 = vlaneseq
    %v833 = vshrl.u32 %v832, 7
    %v834 = vsub.s32 0, %v833
    %v835 = vrot.slane %v827, %v834
    %838 = vrot.lane.b32.xlu0 %v828, 96
    %v839 = vpop.permute.xlu0 %838
    %840 = vrot.lane.b32.xlu0 %v829, 96
    %v841 = vpop.permute.xlu0 %840
    %v843 = vsel %vm259, %v839, 0
    %v846 = vsel %vm259, %v841, 0
    %848 = vmatprep.subr.bf16.mxu0 0
    %849 = vmatpush1.bf16.msra.mxu0 %v830
    %850 = vmatprep.subr.bf16.mxu0 0
    %851 = vmatpush1.bf16.msra.mxu0 %v831
    %852 = vmatprep.subr.bf16.mxu0 0
    %853 = vmatpush1.bf16.msra.mxu0 0
    %854 = vmatprep.subr.bf16.mxu0 0
    %855 = vmatpush1.bf16.msra.mxu0 0
    %856 = vmatprep.subr.bf16.mxu0 0
    %857 = vmatpush1.bf16.msra.mxu0 0
    %858 = vmatprep.subr.bf16.mxu0 0
    %859 = vmatpush1.bf16.msra.mxu0 0
    %860 = vmatprep.subr.bf16.mxu0 0
    %861 = vmatpush1.bf16.msra.mxu0 0
    %862 = vmatprep.subr.bf16.mxu0 0
    %863 = vmatpush1.bf16.msra.mxu0 0
    %864 = vmatprep.subr.bf16.mxu0 0
    %865 = vmatpush1.bf16.msra.mxu0 0
    %866 = vmatprep.subr.bf16.mxu0 0
    %867 = vmatpush1.bf16.msra.mxu0 0
    %868 = vmatprep.subr.bf16.mxu0 0
    %869 = vmatpush1.bf16.msra.mxu0 0
    %870 = vmatprep.subr.bf16.mxu0 0
    %871 = vmatpush1.bf16.msra.mxu0 0
    %872 = vmatprep.subr.bf16.mxu0 0
    %873 = vmatpush1.bf16.msra.mxu0 0
    %874 = vmatprep.subr.bf16.mxu0 0
    %875 = vmatpush1.bf16.msra.mxu0 0
    %876 = vmatprep.subr.bf16.mxu0 0
    %877 = vmatpush1.bf16.msra.mxu0 0
    %878 = vmatprep.subr.bf16.mxu0 0
    %879 = vmatpush1.bf16.msra.mxu0 0
    %880 = vmatprep.mubr.bf16.mxu0 0
    %881 = vmatmul.mubr.bf16.gmra.mrb[0].mxu0 %v843
    %v882 = vpop.f32.mrb[0].mxu0
    %v883 = vadd.f32 %v835, %v882
    %v884 = vpop.f32.mrb[0].mxu0
    %v885 = vpop.f32.mrb[0].mxu0
    %v886 = vadd.f32 %v835, %v885
    %v887 = vpop.f32.mrb[0].mxu0
    %888 = vmatprep.mubr.bf16.mxu0 0
    %889 = vmatmul.mubr.bf16.gmra.mrb[0].mxu0 %v846
    %v890 = vpop.f32.mrb[0].mxu0
    %v891 = vadd.f32 %v835, %v890
    %v892 = vpop.f32.mrb[0].mxu0
    %v893 = vpop.f32.mrb[0].mxu0
    %v894 = vpop.f32.mrb[0].mxu0
    %895 = vdwg.mxu0
    %v896 = vmax.f32 %v883, 0.0
    %v897 = vmax.f32 %v886, 0.0
    %v898 = vmax.f32 %v891, 0.0
    %v899 = vld [vmem:[%s4] sm:$0xff]
    %v900 = vld [vmem:[%s4 + $0x8] sm:$0xff]
    %v901 = vld [vmem:[%s4 + $0x10] sm:$0xff]
    %v902 = vld [vmem:[%s4 + $0x18] sm:$0xff]
    %v903 = vld [vmem:[%s4 + $0x20] sm:$0x1]
    %v904 = vpack.c.bf16 %v897, %v896
    %v905 = vpack.c.bf16 %v898, %v898
    %v906 = vpack.c.bf16 %v900, %v899
    %v907 = vpack.c.bf16 %v902, %v901
    %v908 = vlaneseq
    %v909 = vshrl.u32 %v908, 7
    %v910 = vsub.s32 0, %v909
    %v911 = vrot.slane %v903, %v910
    %v913 = vsel %vm259, %v904, 0
    %v916 = vsel %vm259, %v905, 0
    %918 = vmatprep.subr.bf16.mxu0 0
    %919 = vmatpush1.bf16.msra.mxu0 %v906
    %920 = vmatprep.subr.bf16.mxu0 0
    %921 = vmatpush1.bf16.msra.mxu0 %v907
    %922 = vmatprep.subr.bf16.mxu0 0
    %923 = vmatpush1.bf16.msra.mxu0 0
    %924 = vmatprep.subr.bf16.mxu0 0
    %925 = vmatpush1.bf16.msra.mxu0 0
    %926 = vmatprep.subr.bf16.mxu0 0
    %927 = vmatpush1.bf16.msra.mxu0 0
    %928 = vmatprep.subr.bf16.mxu0 0
    %929 = vmatpush1.bf16.msra.mxu0 0
    %930 = vmatprep.subr.bf16.mxu0 0
    %931 = vmatpush1.bf16.msra.mxu0 0
    %932 = vmatprep.subr.bf16.mxu0 0
    %933 = vmatpush1.bf16.msra.mxu0 0
    %934 = vmatprep.subr.bf16.mxu0 0
    %935 = vmatpush1.bf16.msra.mxu0 0
    %936 = vmatprep.subr.bf16.mxu0 0
    %937 = vmatpush1.bf16.msra.mxu0 0
    %938 = vmatprep.subr.bf16.mxu0 0
    %939 = vmatpush1.bf16.msra.mxu0 0
    %940 = vmatprep.subr.bf16.mxu0 0
    %941 = vmatpush1.bf16.msra.mxu0 0
    %942 = vmatprep.subr.bf16.mxu0 0
    %943 = vmatpush1.bf16.msra.mxu0 0
    %944 = vmatprep.subr.bf16.mxu0 0
    %945 = vmatpush1.bf16.msra.mxu0 0
    %946 = vmatprep.subr.bf16.mxu0 0
    %947 = vmatpush1.bf16.msra.mxu0 0
    %948 = vmatprep.subr.bf16.mxu0 0
    %949 = vmatpush1.bf16.msra.mxu0 0
    %950 = vmatprep.mubr.bf16.mxu0 0
    %951 = vmatmul.mubr.bf16.gmra.mrb[0].mxu0 %v913
    %v952 = vpop.f32.mrb[0].mxu0
    %v953 = vadd.f32 %v911, %v952
    %v954 = vpop.f32.mrb[0].mxu0
    %v955 = vpop.f32.mrb[0].mxu0
    %v956 = vadd.f32 %v911, %v955
    %v957 = vpop.f32.mrb[0].mxu0
    %958 = vmatprep.mubr.bf16.mxu0 0
    %959 = vmatmul.mubr.bf16.gmra.mrb[0].mxu0 %v916
    %v960 = vpop.f32.mrb[0].mxu0
    %v961 = vadd.f32 %v911, %v960
    %v962 = vpop.f32.mrb[0].mxu0
    %v963 = vpop.f32.mrb[0].mxu0
    %v964 = vpop.f32.mrb[0].mxu0
    %965 = vdwg.mxu0
    %966 = vst [vmem:[#allocation2] sm:$0xff] %v953
    %967 = vst [vmem:[#allocation2 + $0x8] sm:$0xff] %v956
    %968 = vst [vmem:[#allocation2 + $0x10] sm:$0xff] %v961
    // Predicated region
    $region22: #{tpu_custom_call.1} parent=1 // pred_check
      _
    $region23: #{tpu_custom_call.1} parent=1 // pred_check_branch
      %970 = sbr.rel (0) target = $region25
    $region24: #{tpu_custom_call.1} parent=1 // pred_region
      %s972 = ssub.s32 384, 384
      %973 = vsyncadd [#allocation3], %s972
      %s974 = sshll.u32 [#allocation2], 4
      %s975 = int_to_ptr.vmem [resolvable:$true] %s974
      %980 = dma.vmem_to_hbm [thread:$0]  %s975, 384, %s5, [#allocation3], 128, 128, 8
    $region25: #{tpu_custom_call.1} parent=1 // pred_fallthru
      _
    // Predicated region
    $region26: #{tpu_custom_call.1} parent=1 // pred_check
      _
    $region27: #{tpu_custom_call.1} parent=1 // pred_check_branch
      %982 = sbr.rel (0) target = $region29
    $region28: #{tpu_custom_call.1} parent=1 // pred_region
      %983 = dma.done [#allocation3], 384
    $region29: #{tpu_custom_call.1} parent=1 // pred_fallthru
      _
    %984 = vsyncpa [#allocation3], 1

</llo_original>
